<compile_context>
chip_gen: v7x
topology: tpu7x:2x2x1
jax: 0.10.0
libtpu: 0.0.40
codegen_flags: <defaults>
</compile_context>

<pallas_src>
import numpy as np
import jax
import jax.numpy as jnp
from jax.experimental import pallas as pl
from jax.experimental.pallas import tpu as pltpu

IN_DIM = 32     # in_dim of the module
MEM_DIM = 32    # mem_dim of the module
MAXC = 4        # padded max #children per node (zero-padded; leaves == all-zero)
NB = 8          # node block (grid tile along the node axis)


# ----------------------------------------------------------------------------
# Pallas kernel: fused node_forward for a block of NB nodes
# ----------------------------------------------------------------------------
def _treelstm_level_kernel(x_ref, ch_ref, cc_ref, s_ref, r_ref,
                           wioux_ref, bioux_ref, wiouh_ref, biouh_ref,
                           wfx_ref, bfx_ref, wfh_ref, bfh_ref,
                           cout_ref, hout_ref):
    m = MEM_DIM
    sig = lambda z: 1.0 / (1.0 + jnp.exp(-z))

    x = x_ref[...]           # (NB, in_dim)           node input vectors
    ch = ch_ref[...]         # (NB*MAXC, m)           children h (zero padded)
    cc = cc_ref[...]         # (NB*MAXC, m)           children c (zero padded)
    S = s_ref[...]           # (NB, NB*MAXC)          0/1 child->parent sum
    R = r_ref[...]           # (NB*MAXC, NB)          0/1 parent->child repeat

    # child_h_sum = sum over each node's children
    h_sum = jnp.dot(S, ch, preferred_element_type=jnp.float32)          # (NB, m)

    # iou = ioux(x) + iouh(child_h_sum)
    iou = (jnp.dot(x, wioux_ref[...], preferred_element_type=jnp.float32)
           + bioux_ref[...]
           + jnp.dot(h_sum, wiouh_ref[...], preferred_element_type=jnp.float32)
           + biouh_ref[...])                                            # (NB, 3m)
    i = sig(iou[:, 0:m])
    o = sig(iou[:, m:2 * m])
    u = jnp.tanh(iou[:, 2 * m:3 * m])

    # f = sigmoid(fh(child_h) + fx(x) broadcast over children)
    fx = jnp.dot(x, wfx_ref[...], preferred_element_type=jnp.float32) + bfx_ref[...]
    fx_rep = jnp.dot(R, fx, preferred_element_type=jnp.float32)         # (NB*MAXC, m)
    f = sig(jnp.dot(ch, wfh_ref[...], preferred_element_type=jnp.float32)
            + bfh_ref[...] + fx_rep)                                    # (NB*MAXC, m)

    # sum_j f_j * c_j per node (padded children contribute exactly 0)
    fc_sum = jnp.dot(S, f * cc, preferred_element_type=jnp.float32)     # (NB, m)

    c = i * u + fc_sum
    h = o * jnp.tanh(c)
    cout_ref[...] = c
    hout_ref[...] = h


def treelstm_level(x, ch2, cc2, seg_sum, seg_rep, params):
    """Fused node_forward for one tree level (padded to a multiple of NB nodes)."""
    n = x.shape[0]
    grid = (n // NB,)
    (wioux, bioux, wiouh, biouh, wfx, bfx, wfh, bfh) = params

    def const_spec(a):                      # weights / small constants stay resident
        return pl.BlockSpec(a.shape, lambda i: (0, 0))

    return pl.pallas_call(
        _treelstm_level_kernel,
        out_shape=(jax.ShapeDtypeStruct((n, MEM_DIM), jnp.float32),
                   jax.ShapeDtypeStruct((n, MEM_DIM), jnp.float32)),
        grid_spec=pltpu.PrefetchScalarGridSpec(
            num_scalar_prefetch=0,
            grid=grid,
            in_specs=[
                pl.BlockSpec((NB, IN_DIM), lambda i: (i, 0)),
                pl.BlockSpec((NB * MAXC, MEM_DIM), lambda i: (i, 0)),
                pl.BlockSpec((NB * MAXC, MEM_DIM), lambda i: (i, 0)),
                const_spec(seg_sum), const_spec(seg_rep),
                const_spec(wioux), const_spec(bioux),
                const_spec(wiouh), const_spec(biouh),
                const_spec(wfx), const_spec(bfx),
                const_spec(wfh), const_spec(bfh),
            ],
            out_specs=(pl.BlockSpec((NB, MEM_DIM), lambda i: (i, 0)),
                       pl.BlockSpec((NB, MEM_DIM), lambda i: (i, 0))),
        ),
        compiler_params=pltpu.CompilerParams(
            dimension_semantics=("parallel",)),
    )(x, ch2, cc2, seg_sum, seg_rep,
      wioux, bioux, wiouh, biouh, wfx, bfx, wfh, bfh)


# ----------------------------------------------------------------------------
# Level-wise driver (gather children / scatter results in XLA, compute in Pallas)
# ----------------------------------------------------------------------------
@jax.jit
def _level_step(state_c, state_h, values_ext, child_idx_ext, ids,
                seg_sum, seg_rep, params):
    x = values_ext[ids]                                   # (n_pad, in_dim)
    cidx = child_idx_ext[ids].reshape(-1)                 # (n_pad*MAXC,)
    ch2 = state_h[cidx]                                   # (n_pad*MAXC, mem)
    cc2 = state_c[cidx]
    c_new, h_new = treelstm_level(x, ch2, cc2, seg_sum, seg_rep, params)
    state_c = state_c.at[ids].set(c_new)
    state_h = state_h.at[ids].set(h_new)
    # padded ids all alias the sentinel "no child" row -> keep it exactly zero
    state_c = state_c.at[-1].set(0.0)
    state_h = state_h.at[-1].set(0.0)
    return state_c, state_h


def childsum_treelstm_forward(values, child_idx_ext, level_ids, root_idx,
                              params, n_pad):
    num_nodes = values.shape[0]
    values_ext = jnp.concatenate(
        [values, jnp.zeros((1, IN_DIM), jnp.float32)], axis=0)
    child_idx_ext = jnp.asarray(child_idx_ext)
    state_c = jnp.zeros((num_nodes + 1, MEM_DIM), jnp.float32)
    state_h = jnp.zeros((num_nodes + 1, MEM_DIM), jnp.float32)

    # 0/1 segment-sum (child->parent) and repeat (parent->child) matrices
    S = np.zeros((NB, NB * MAXC), np.float32)
    for a in range(NB):
        S[a, a * MAXC:(a + 1) * MAXC] = 1.0
    seg_sum = jnp.asarray(S)
    seg_rep = jnp.asarray(S.T.copy())

    for lvl in level_ids:                       # leaves -> root
        ids = np.full((n_pad,), num_nodes, np.int32)   # pad with sentinel index
        ids[:len(lvl)] = lvl
        state_c, state_h = _level_step(state_c, state_h, values_ext,
                                       child_idx_ext, jnp.asarray(ids),
                                       seg_sum, seg_rep, params)
    return (state_c[root_idx:root_idx + 1], state_h[root_idx:root_idx + 1])


# ----------------------------------------------------------------------------
# Tree construction / parameters
# ----------------------------------------------------------------------------
class _Node:
    __slots__ = ("children", "idx", "height")

    def __init__(self, children):
        self.children = children
        self.idx = -1
        self.height = 0 if not children else 1 + max(c.height for c in children)


def build_tree(spec):
    return _Node([build_tree(s) for s in spec])


def index_tree(root):
    nodes = []

    def rec(n):
        for c in n.children:
            rec(c)
        n.idx = len(nodes)
        nodes.append(n)

    rec(root)
    return nodes


def init_params(key):
    ks = jax.random.split(key, 4)

    def lin(k, fin, fout):
        kw, kb = jax.random.split(k)
        lim = 1.0 / np.sqrt(fin)
        w = jax.random.uniform(kw, (fin, fout), jnp.float32, -lim, lim)
        b = jax.random.uniform(kb, (1, fout), jnp.float32, -lim, lim)
        return w, b

    wioux, bioux = lin(ks[0], IN_DIM, 3 * MEM_DIM)
    wiouh, biouh = lin(ks[1], MEM_DIM, 3 * MEM_DIM)
    wfx, bfx = lin(ks[2], IN_DIM, MEM_DIM)
    wfh, bfh = lin(ks[3], MEM_DIM, MEM_DIM)
    return (wioux, bioux, wiouh, biouh, wfx, bfx, wfh, bfh)


# ----------------------------------------------------------------------------
# Pure-numpy reference (mirrors the PyTorch recursion exactly)
# ----------------------------------------------------------------------------
def _np_sigmoid(x):
    return 1.0 / (1.0 + np.exp(-x))


def ref_node_forward(x, child_c, child_h, params):
    wioux, bioux, wiouh, biouh, wfx, bfx, wfh, bfh = [np.asarray(p) for p in params]
    x = x[None, :]
    m = MEM_DIM
    h_sum = child_h.sum(0, keepdims=True)
    iou = x @ wioux + bioux + h_sum @ wiouh + biouh
    i = _np_sigmoid(iou[:, :m])
    o = _np_sigmoid(iou[:, m:2 * m])
    u = np.tanh(iou[:, 2 * m:3 * m])
    f = _np_sigmoid(child_h @ wfh + bfh + (x @ wfx + bfx))
    c = i * u + (f * child_c).sum(0, keepdims=True)
    h = o * np.tanh(c)
    return c, h


def ref_forward(node, values, params):
    if not node.children:
        child_c = np.zeros((1, MEM_DIM), np.float32)
        child_h = np.zeros((1, MEM_DIM), np.float32)
    else:
        cs, hs = zip(*(ref_forward(c, values, params) for c in node.children))
        child_c = np.concatenate(cs, 0)
        child_h = np.concatenate(hs, 0)
    return ref_node_forward(values[node.idx], child_c, child_h, params)


# ----------------------------------------------------------------------------
if __name__ == "__main__":
    key = jax.random.PRNGKey(0)
    kp, kv = jax.random.split(key)
    params = init_params(kp)

    # deterministic small tree: 13 nodes, max 3 children, depth 4
    TREE_SPEC = (((), (), ()), ((), ()), (((), ()), ()))
    root = build_tree(TREE_SPEC)
    nodes = index_tree(root)
    num_nodes = len(nodes)
    assert max(len(n.children) for n in nodes) <= MAXC

    values = jax.random.normal(kv, (num_nodes, IN_DIM), jnp.float32)

    # child index table with an extra sentinel row (index == num_nodes -> zero state)
    child_idx_ext = np.full((num_nodes + 1, MAXC), num_nodes, np.int32)
    for n in nodes:
        for j, c in enumerate(n.children):
            child_idx_ext[n.idx, j] = c.idx

    # levelize by height (leaves first)
    by_height = {}
    for n in nodes:
        by_height.setdefault(n.height, []).append(n.idx)
    level_ids = [by_height[h] for h in sorted(by_height)]
    max_width = max(len(l) for l in level_ids)
    n_pad = ((max_width + NB - 1) // NB) * NB

    c_root, h_root = childsum_treelstm_forward(
        values, child_idx_ext, level_ids, root.idx, params, n_pad)
    c_root, h_root = jax.block_until_ready((c_root, h_root))

    assert c_root.shape == (1, MEM_DIM) and h_root.shape == (1, MEM_DIM)
    assert bool(jnp.all(jnp.isfinite(c_root))) and bool(jnp.all(jnp.isfinite(h_root)))

    # check against the exact recursive reference
    c_ref, h_ref = ref_forward(root, np.asarray(values), params)
    np.testing.assert_allclose(np.asarray(c_root), c_ref, rtol=5e-2, atol=5e-2)
    np.testing.assert_allclose(np.asarray(h_root), h_ref, rtol=5e-2, atol=5e-2)

    print("KERNEL_OK")
</pallas_src>

<mosaic_0001>
module attributes {stable_mosaic.version = 11 : i64} {
  func.func @_treelstm_level_kernel(%arg0: i32, %arg1: memref<8x32xf32, #tpu.memory_space<vmem>>, %arg2: memref<32x32xf32, #tpu.memory_space<vmem>>, %arg3: memref<32x32xf32, #tpu.memory_space<vmem>>, %arg4: memref<8x32xf32, #tpu.memory_space<vmem>>, %arg5: memref<32x8xf32, #tpu.memory_space<vmem>>, %arg6: memref<32x96xf32, #tpu.memory_space<vmem>>, %arg7: memref<1x96xf32, #tpu.memory_space<vmem>>, %arg8: memref<32x96xf32, #tpu.memory_space<vmem>>, %arg9: memref<1x96xf32, #tpu.memory_space<vmem>>, %arg10: memref<32x32xf32, #tpu.memory_space<vmem>>, %arg11: memref<1x32xf32, #tpu.memory_space<vmem>>, %arg12: memref<32x32xf32, #tpu.memory_space<vmem>>, %arg13: memref<1x32xf32, #tpu.memory_space<vmem>>, %arg14: memref<8x32xf32, #tpu.memory_space<vmem>>, %arg15: memref<8x32xf32, #tpu.memory_space<vmem>>) attributes {dimension_semantics = [#tpu.dimension_semantics<parallel>], iteration_bounds = array<i64: 1>, scalar_prefetch = 0 : i64, scratch_operands = 0 : i64, tpu.core_type = #tpu.core_type<tc>, window_params = [{transform_indices = @transform_0, window_bounds = array<i64: 8, 32>}, {transform_indices = @transform_1, window_bounds = array<i64: 32, 32>}, {transform_indices = @transform_2, window_bounds = array<i64: 32, 32>}, {pipeline_mode = #tpu.pipeline_mode<synchronous>, transform_indices = @transform_3, window_bounds = array<i64: 8, 32>}, {pipeline_mode = #tpu.pipeline_mode<synchronous>, transform_indices = @transform_4, window_bounds = array<i64: 32, 8>}, {pipeline_mode = #tpu.pipeline_mode<synchronous>, transform_indices = @transform_5, window_bounds = array<i64: 32, 96>}, {pipeline_mode = #tpu.pipeline_mode<synchronous>, transform_indices = @transform_6, window_bounds = array<i64: 1, 96>}, {pipeline_mode = #tpu.pipeline_mode<synchronous>, transform_indices = @transform_7, window_bounds = array<i64: 32, 96>}, {pipeline_mode = #tpu.pipeline_mode<synchronous>, transform_indices = @transform_8, window_bounds = array<i64: 1, 96>}, {pipeline_mode = #tpu.pipeline_mode<synchronous>, transform_indices = @transform_9, window_bounds = array<i64: 32, 32>}, {pipeline_mode = #tpu.pipeline_mode<synchronous>, transform_indices = @transform_10, window_bounds = array<i64: 1, 32>}, {pipeline_mode = #tpu.pipeline_mode<synchronous>, transform_indices = @transform_11, window_bounds = array<i64: 32, 32>}, {pipeline_mode = #tpu.pipeline_mode<synchronous>, transform_indices = @transform_12, window_bounds = array<i64: 1, 32>}, {transform_indices = @transform_13, window_bounds = array<i64: 8, 32>}, {transform_indices = @transform_14, window_bounds = array<i64: 8, 32>}]} {
    %c0 = arith.constant 0 : index
    %c0_0 = arith.constant 0 : index
    %0 = vector.load %arg1[%c0, %c0_0] : memref<8x32xf32, #tpu.memory_space<vmem>>, vector<8x32xf32>
    %c0_1 = arith.constant 0 : index
    %c0_2 = arith.constant 0 : index
    %1 = vector.load %arg2[%c0_1, %c0_2] : memref<32x32xf32, #tpu.memory_space<vmem>>, vector<32x32xf32>
    %c0_3 = arith.constant 0 : index
    %c0_4 = arith.constant 0 : index
    %2 = vector.load %arg3[%c0_3, %c0_4] : memref<32x32xf32, #tpu.memory_space<vmem>>, vector<32x32xf32>
    %c0_5 = arith.constant 0 : index
    %c0_6 = arith.constant 0 : index
    %3 = vector.load %arg4[%c0_5, %c0_6] : memref<8x32xf32, #tpu.memory_space<vmem>>, vector<8x32xf32>
    %c0_7 = arith.constant 0 : index
    %c0_8 = arith.constant 0 : index
    %4 = vector.load %arg5[%c0_7, %c0_8] : memref<32x8xf32, #tpu.memory_space<vmem>>, vector<32x8xf32>
    %cst = arith.constant dense<0.000000e+00> : vector<8x32xf32>
    %5 = tpu.matmul %3, %1, %cst {dimension_numbers = #tpu.dot_dimension_numbers<[1], [0], [0], [1], [0, 0, 1, 1], [], []>} : vector<8x32xf32>, vector<32x32xf32>, vector<8x32xf32> -> vector<8x32xf32>
    %c0_9 = arith.constant 0 : index
    %c0_10 = arith.constant 0 : index
    %6 = vector.load %arg6[%c0_9, %c0_10] : memref<32x96xf32, #tpu.memory_space<vmem>>, vector<32x96xf32>
    %cst_11 = arith.constant dense<0.000000e+00> : vector<8x96xf32>
    %7 = tpu.matmul %0, %6, %cst_11 {dimension_numbers = #tpu.dot_dimension_numbers<[1], [0], [0], [1], [0, 0, 1, 1], [], []>} : vector<8x32xf32>, vector<32x96xf32>, vector<8x96xf32> -> vector<8x96xf32>
    %c0_12 = arith.constant 0 : index
    %c0_13 = arith.constant 0 : index
    %8 = vector.load %arg7[%c0_12, %c0_13] : memref<1x96xf32, #tpu.memory_space<vmem>>, vector<1x96xf32>
    %9 = vector.broadcast %8 : vector<1x96xf32> to vector<8x96xf32>
    %10 = arith.addf %7, %9 : vector<8x96xf32>
    %c0_14 = arith.constant 0 : index
    %c0_15 = arith.constant 0 : index
    %11 = vector.load %arg8[%c0_14, %c0_15] : memref<32x96xf32, #tpu.memory_space<vmem>>, vector<32x96xf32>
    %cst_16 = arith.constant dense<0.000000e+00> : vector<8x96xf32>
    %12 = tpu.matmul %5, %11, %cst_16 {dimension_numbers = #tpu.dot_dimension_numbers<[1], [0], [0], [1], [0, 0, 1, 1], [], []>} : vector<8x32xf32>, vector<32x96xf32>, vector<8x96xf32> -> vector<8x96xf32>
    %13 = arith.addf %10, %12 : vector<8x96xf32>
    %c0_17 = arith.constant 0 : index
    %c0_18 = arith.constant 0 : index
    %14 = vector.load %arg9[%c0_17, %c0_18] : memref<1x96xf32, #tpu.memory_space<vmem>>, vector<1x96xf32>
    %15 = vector.broadcast %14 : vector<1x96xf32> to vector<8x96xf32>
    %16 = arith.addf %13, %15 : vector<8x96xf32>
    %17 = vector.extract_strided_slice %16 {offsets = [0, 0], sizes = [8, 32], strides = [1, 1]} : vector<8x96xf32> to vector<8x32xf32>
    %cst_19 = arith.constant 0.000000e+00 : f32
    %18 = vector.broadcast %cst_19 : f32 to vector<8x32xf32>
    %19 = arith.subf %18, %17 : vector<8x32xf32>
    %20 = math.exp %19 : vector<8x32xf32>
    %cst_20 = arith.constant 1.000000e+00 : f32
    %21 = vector.broadcast %cst_20 : f32 to vector<8x32xf32>
    %22 = arith.addf %21, %20 : vector<8x32xf32>
    %cst_21 = arith.constant 1.000000e+00 : f32
    %23 = vector.broadcast %cst_21 : f32 to vector<8x32xf32>
    %24 = arith.divf %23, %22 : vector<8x32xf32>
    %25 = vector.extract_strided_slice %16 {offsets = [0, 32], sizes = [8, 32], strides = [1, 1]} : vector<8x96xf32> to vector<8x32xf32>
    %cst_22 = arith.constant 0.000000e+00 : f32
    %26 = vector.broadcast %cst_22 : f32 to vector<8x32xf32>
    %27 = arith.subf %26, %25 : vector<8x32xf32>
    %28 = math.exp %27 : vector<8x32xf32>
    %cst_23 = arith.constant 1.000000e+00 : f32
    %29 = vector.broadcast %cst_23 : f32 to vector<8x32xf32>
    %30 = arith.addf %29, %28 : vector<8x32xf32>
    %cst_24 = arith.constant 1.000000e+00 : f32
    %31 = vector.broadcast %cst_24 : f32 to vector<8x32xf32>
    %32 = arith.divf %31, %30 : vector<8x32xf32>
    %33 = vector.extract_strided_slice %16 {offsets = [0, 64], sizes = [8, 32], strides = [1, 1]} : vector<8x96xf32> to vector<8x32xf32>
    %34 = math.tanh %33 : vector<8x32xf32>
    %c0_25 = arith.constant 0 : index
    %c0_26 = arith.constant 0 : index
    %35 = vector.load %arg10[%c0_25, %c0_26] : memref<32x32xf32, #tpu.memory_space<vmem>>, vector<32x32xf32>
    %cst_27 = arith.constant dense<0.000000e+00> : vector<8x32xf32>
    %36 = tpu.matmul %0, %35, %cst_27 {dimension_numbers = #tpu.dot_dimension_numbers<[1], [0], [0], [1], [0, 0, 1, 1], [], []>} : vector<8x32xf32>, vector<32x32xf32>, vector<8x32xf32> -> vector<8x32xf32>
    %c0_28 = arith.constant 0 : index
    %c0_29 = arith.constant 0 : index
    %37 = vector.load %arg11[%c0_28, %c0_29] : memref<1x32xf32, #tpu.memory_space<vmem>>, vector<1x32xf32>
    %38 = vector.broadcast %37 : vector<1x32xf32> to vector<8x32xf32>
    %39 = arith.addf %36, %38 : vector<8x32xf32>
    %cst_30 = arith.constant dense<0.000000e+00> : vector<32x32xf32>
    %40 = tpu.matmul %4, %39, %cst_30 {dimension_numbers = #tpu.dot_dimension_numbers<[1], [0], [0], [1], [0, 0, 1, 1], [], []>} : vector<32x8xf32>, vector<8x32xf32>, vector<32x32xf32> -> vector<32x32xf32>
    %c0_31 = arith.constant 0 : index
    %c0_32 = arith.constant 0 : index
    %41 = vector.load %arg12[%c0_31, %c0_32] : memref<32x32xf32, #tpu.memory_space<vmem>>, vector<32x32xf32>
    %cst_33 = arith.constant dense<0.000000e+00> : vector<32x32xf32>
    %42 = tpu.matmul %1, %41, %cst_33 {dimension_numbers = #tpu.dot_dimension_numbers<[1], [0], [0], [1], [0, 0, 1, 1], [], []>} : vector<32x32xf32>, vector<32x32xf32>, vector<32x32xf32> -> vector<32x32xf32>
    %c0_34 = arith.constant 0 : index
    %c0_35 = arith.constant 0 : index
    %43 = vector.load %arg13[%c0_34, %c0_35] : memref<1x32xf32, #tpu.memory_space<vmem>>, vector<1x32xf32>
    %44 = vector.broadcast %43 : vector<1x32xf32> to vector<32x32xf32>
    %45 = arith.addf %42, %44 : vector<32x32xf32>
    %46 = arith.addf %45, %40 : vector<32x32xf32>
    %cst_36 = arith.constant 0.000000e+00 : f32
    %47 = vector.broadcast %cst_36 : f32 to vector<32x32xf32>
    %48 = arith.subf %47, %46 : vector<32x32xf32>
    %49 = math.exp %48 : vector<32x32xf32>
    %cst_37 = arith.constant 1.000000e+00 : f32
    %50 = vector.broadcast %cst_37 : f32 to vector<32x32xf32>
    %51 = arith.addf %50, %49 : vector<32x32xf32>
    %cst_38 = arith.constant 1.000000e+00 : f32
    %52 = vector.broadcast %cst_38 : f32 to vector<32x32xf32>
    %53 = arith.divf %52, %51 : vector<32x32xf32>
    %54 = arith.mulf %53, %2 : vector<32x32xf32>
    %cst_39 = arith.constant dense<0.000000e+00> : vector<8x32xf32>
    %55 = tpu.matmul %3, %54, %cst_39 {dimension_numbers = #tpu.dot_dimension_numbers<[1], [0], [0], [1], [0, 0, 1, 1], [], []>} : vector<8x32xf32>, vector<32x32xf32>, vector<8x32xf32> -> vector<8x32xf32>
    %56 = arith.mulf %24, %34 : vector<8x32xf32>
    %57 = arith.addf %56, %55 : vector<8x32xf32>
    %58 = math.tanh %57 : vector<8x32xf32>
    %59 = arith.mulf %32, %58 : vector<8x32xf32>
    %c0_40 = arith.constant 0 : index
    %c0_41 = arith.constant 0 : index
    %60 = vector.load %arg14[%c0_40, %c0_41] : memref<8x32xf32, #tpu.memory_space<vmem>>, vector<8x32xf32>
    tpu.vector_store %arg14[%c0_40, %c0_41], %57 {strides = array<i32>} : memref<8x32xf32, #tpu.memory_space<vmem>>, vector<8x32xf32>,
    %c0_42 = arith.constant 0 : index
    %c0_43 = arith.constant 0 : index
    %61 = vector.load %arg15[%c0_42, %c0_43] : memref<8x32xf32, #tpu.memory_space<vmem>>, vector<8x32xf32>
    tpu.vector_store %arg15[%c0_42, %c0_43], %59 {strides = array<i32>} : memref<8x32xf32, #tpu.memory_space<vmem>>, vector<8x32xf32>,
    return
  }
  func.func @transform_0(%arg0: i32) -> (i32, i32) {
    %c0_i32 = arith.constant 0 : i32
    %c0_i32_0 = arith.constant 0 : i32
    return %arg0, %c0_i32 : i32, i32
  }
  func.func @transform_1(%arg0: i32) -> (i32, i32) {
    %c0_i32 = arith.constant 0 : i32
    %c0_i32_0 = arith.constant 0 : i32
    return %arg0, %c0_i32 : i32, i32
  }
  func.func @transform_2(%arg0: i32) -> (i32, i32) {
    %c0_i32 = arith.constant 0 : i32
    %c0_i32_0 = arith.constant 0 : i32
    return %arg0, %c0_i32 : i32, i32
  }
  func.func @transform_3(%arg0: i32) -> (i32, i32) {
    %c0_i32 = arith.constant 0 : i32
    %c0_i32_0 = arith.constant 0 : i32
    %c0_i32_1 = arith.constant 0 : i32
    return %c0_i32, %c0_i32_0 : i32, i32
  }
  func.func @transform_4(%arg0: i32) -> (i32, i32) {
    %c0_i32 = arith.constant 0 : i32
    %c0_i32_0 = arith.constant 0 : i32
    %c0_i32_1 = arith.constant 0 : i32
    return %c0_i32, %c0_i32_0 : i32, i32
  }
  func.func @transform_5(%arg0: i32) -> (i32, i32) {
    %c0_i32 = arith.constant 0 : i32
    %c0_i32_0 = arith.constant 0 : i32
    %c0_i32_1 = arith.constant 0 : i32
    return %c0_i32, %c0_i32_0 : i32, i32
  }
  func.func @transform_6(%arg0: i32) -> (i32, i32) {
    %c0_i32 = arith.constant 0 : i32
    %c0_i32_0 = arith.constant 0 : i32
    %c0_i32_1 = arith.constant 0 : i32
    return %c0_i32, %c0_i32_0 : i32, i32
  }
  func.func @transform_7(%arg0: i32) -> (i32, i32) {
    %c0_i32 = arith.constant 0 : i32
    %c0_i32_0 = arith.constant 0 : i32
    %c0_i32_1 = arith.constant 0 : i32
    return %c0_i32, %c0_i32_0 : i32, i32
  }
  func.func @transform_8(%arg0: i32) -> (i32, i32) {
    %c0_i32 = arith.constant 0 : i32
    %c0_i32_0 = arith.constant 0 : i32
    %c0_i32_1 = arith.constant 0 : i32
    return %c0_i32, %c0_i32_0 : i32, i32
  }
  func.func @transform_9(%arg0: i32) -> (i32, i32) {
    %c0_i32 = arith.constant 0 : i32
    %c0_i32_0 = arith.constant 0 : i32
    %c0_i32_1 = arith.constant 0 : i32
    return %c0_i32, %c0_i32_0 : i32, i32
  }
  func.func @transform_10(%arg0: i32) -> (i32, i32) {
    %c0_i32 = arith.constant 0 : i32
    %c0_i32_0 = arith.constant 0 : i32
    %c0_i32_1 = arith.constant 0 : i32
    return %c0_i32, %c0_i32_0 : i32, i32
  }
  func.func @transform_11(%arg0: i32) -> (i32, i32) {
    %c0_i32 = arith.constant 0 : i32
    %c0_i32_0 = arith.constant 0 : i32
    %c0_i32_1 = arith.constant 0 : i32
    return %c0_i32, %c0_i32_0 : i32, i32
  }
  func.func @transform_12(%arg0: i32) -> (i32, i32) {
    %c0_i32 = arith.constant 0 : i32
    %c0_i32_0 = arith.constant 0 : i32
    %c0_i32_1 = arith.constant 0 : i32
    return %c0_i32, %c0_i32_0 : i32, i32
  }
  func.func @transform_13(%arg0: i32) -> (i32, i32) {
    %c0_i32 = arith.constant 0 : i32
    %c0_i32_0 = arith.constant 0 : i32
    return %arg0, %c0_i32 : i32, i32
  }
  func.func @transform_14(%arg0: i32) -> (i32, i32) {
    %c0_i32 = arith.constant 0 : i32
    %c0_i32_0 = arith.constant 0 : i32
    return %arg0, %c0_i32 : i32, i32
  }
}

</mosaic_0001>

<llo_original>
// kernel: _level_step.1
$region0: #{_level_step.1}
  #allocation0 [shape = 'u32[]', space=smem, size = 0x4, offset = 0x4, fixed_abs, tag = 'smem constant byte address 0x4 - core index']
  #allocation1 [shape = 'u32[144,128]{1,0:T(1,128)}', space=vmem, size = 0x12000, scoped, tag = 'internal scratch']
  %s0 = inlined_call_operand.vmem [shape: f32[8,32], index: 0, kind: input, shape index: {}]
  %s1 = inlined_call_operand.vmem [shape: f32[32,32], index: 1, kind: input, shape index: {}]
  %s2 = inlined_call_operand.vmem [shape: f32[32,32], index: 2, kind: input, shape index: {}]
  %s3 = inlined_call_operand.vmem [shape: f32[8,32], index: 3, kind: input, shape index: {}]
  %s4 = inlined_call_operand.vmem [shape: f32[32,8], index: 4, kind: input, shape index: {}]
  %s5 = inlined_call_operand.vmem [shape: f32[32,96], index: 5, kind: input, shape index: {}]
  %s6 = inlined_call_operand.vmem [shape: f32[1,96], index: 6, kind: input, shape index: {}]
  %s7 = inlined_call_operand.vmem [shape: f32[32,96], index: 7, kind: input, shape index: {}]
  %s8 = inlined_call_operand.vmem [shape: f32[1,96], index: 8, kind: input, shape index: {}]
  %s9 = inlined_call_operand.vmem [shape: f32[32,32], index: 9, kind: input, shape index: {}]
  %s10 = inlined_call_operand.vmem [shape: f32[1,32], index: 10, kind: input, shape index: {}]
  %s11 = inlined_call_operand.vmem [shape: f32[32,32], index: 11, kind: input, shape index: {}]
  %s12 = inlined_call_operand.vmem [shape: f32[1,32], index: 12, kind: input, shape index: {}]
  %s13 = inlined_call_operand.vmem [shape: f32[8,32], index: 13, kind: output, shape index: {0}]
  %s14 = inlined_call_operand.vmem [shape: f32[8,32], index: 14, kind: output, shape index: {1}]
  %15 = xla_tuple %s13, %s14
  %s16 = sld [smem:[#allocation0]]
  $region70: #{_level_step.1} parent=0
    _
  %s18 = ssub.s32 1, %s16
  %s19 = scalar_select 0, %s18, %s16
  // Predicated region
  $region2: #{_level_step.1} parent=0 // pred_check
    _
  $region3: #{_level_step.1} parent=0 // pred_check_branch
    %21 = sbr.rel (0) target = $region5
  $region4: #{_level_step.1} parent=0 // pred_region
    _
  $region5: #{_level_step.1} parent=0 // pred_fallthru
    _
  // Predicated region
  $region6: #{_level_step.1} parent=0 // pred_check
    _
  $region7: #{_level_step.1} parent=0 // pred_check_branch
    %23 = sbr.rel (0) target = $region9
  $region8: #{_level_step.1} parent=0 // pred_region
    _
  $region9: #{_level_step.1} parent=0 // pred_fallthru
    _
  // Predicated region
  $region10: #{_level_step.1} parent=0 // pred_check
    _
  $region11: #{_level_step.1} parent=0 // pred_check_branch
    %25 = sbr.rel (0) target = $region13
  $region12: #{_level_step.1} parent=0 // pred_region
    _
  $region13: #{_level_step.1} parent=0 // pred_fallthru
    _
  // Predicated region
  $region14: #{_level_step.1} parent=0 // pred_check
    _
  $region15: #{_level_step.1} parent=0 // pred_check_branch
    %27 = sbr.rel (0) target = $region17
  $region16: #{_level_step.1} parent=0 // pred_region
    _
  $region17: #{_level_step.1} parent=0 // pred_fallthru
    _
  // Predicated region
  $region18: #{_level_step.1} parent=0 // pred_check
    _
  $region19: #{_level_step.1} parent=0 // pred_check_branch
    %29 = sbr.rel (0) target = $region21
  $region20: #{_level_step.1} parent=0 // pred_region
    _
  $region21: #{_level_step.1} parent=0 // pred_fallthru
    _
  // Predicated region
  $region22: #{_level_step.1} parent=0 // pred_check
    _
  $region23: #{_level_step.1} parent=0 // pred_check_branch
    %31 = sbr.rel (0) target = $region25
  $region24: #{_level_step.1} parent=0 // pred_region
    _
  $region25: #{_level_step.1} parent=0 // pred_fallthru
    _
  // Predicated region
  $region26: #{_level_step.1} parent=0 // pred_check
    _
  $region27: #{_level_step.1} parent=0 // pred_check_branch
    %33 = sbr.rel (0) target = $region29
  $region28: #{_level_step.1} parent=0 // pred_region
    _
  $region29: #{_level_step.1} parent=0 // pred_fallthru
    _
  // Predicated region
  $region30: #{_level_step.1} parent=0 // pred_check
    _
  $region31: #{_level_step.1} parent=0 // pred_check_branch
    %35 = sbr.rel (0) target = $region33
  $region32: #{_level_step.1} parent=0 // pred_region
    _
  $region33: #{_level_step.1} parent=0 // pred_fallthru
    _
  // Predicated region
  $region34: #{_level_step.1} parent=0 // pred_check
    _
  $region35: #{_level_step.1} parent=0 // pred_check_branch
    %37 = sbr.rel (0) target = $region37
  $region36: #{_level_step.1} parent=0 // pred_region
    _
  $region37: #{_level_step.1} parent=0 // pred_fallthru
    _
  // Predicated region
  $region38: #{_level_step.1} parent=0 // pred_check
    _
  $region39: #{_level_step.1} parent=0 // pred_check_branch
    %39 = sbr.rel (0) target = $region41
  $region40: #{_level_step.1} parent=0 // pred_region
    _
  $region41: #{_level_step.1} parent=0 // pred_fallthru
    _
  // Predicated region
  $region42: #{_level_step.1} parent=0 // pred_check
    _
  $region43: #{_level_step.1} parent=0 // pred_check_branch
    %41 = sbr.rel (0) target = $region45
  $region44: #{_level_step.1} parent=0 // pred_region
    _
  $region45: #{_level_step.1} parent=0 // pred_fallthru
    _
  // Predicated region
  $region46: #{_level_step.1} parent=0 // pred_check
    _
  $region47: #{_level_step.1} parent=0 // pred_check_branch
    %43 = sbr.rel (0) target = $region49
  $region48: #{_level_step.1} parent=0 // pred_region
    _
  $region49: #{_level_step.1} parent=0 // pred_fallthru
    _
  // Predicated region
  $region50: #{_level_step.1} parent=0 // pred_check
    _
  $region51: #{_level_step.1} parent=0 // pred_check_branch
    %45 = sbr.rel (0) target = $region53
  $region52: #{_level_step.1} parent=0 // pred_region
    _
  $region53: #{_level_step.1} parent=0 // pred_fallthru
    _
  %v46 = vld [vmem:[%s0] sm:$0xff]
  %v47 = vld [vmem:[%s1] sm:$0xff]
  %v48 = vld [vmem:[%s1 + $0x8] sm:$0xff]
  %v49 = vld [vmem:[%s1 + $0x10] sm:$0xff]
  %v50 = vld [vmem:[%s1 + $0x18] sm:$0xff]
  %v51 = vld [vmem:[%s2] sm:$0xff]
  %v52 = vld [vmem:[%s2 + $0x8] sm:$0xff]
  %v53 = vld [vmem:[%s2 + $0x10] sm:$0xff]
  %v54 = vld [vmem:[%s2 + $0x18] sm:$0xff]
  %v55 = vld [vmem:[%s3] sm:$0xff]
  %v56 = vld [vmem:[%s4] sm:$0xff]
  %v57 = vld [vmem:[%s4 + $0x8] sm:$0xff]
  %v58 = vld [vmem:[%s4 + $0x10] sm:$0xff]
  %v59 = vld [vmem:[%s4 + $0x18] sm:$0xff]
  %vm60 = vcmask 261120
  %v62 = vsel %vm60, %v55, 0
  %64 = vmatprep.subr.mxu0 0.0
  %65 = vmatpush1.msra.mxu0 %v47
  %66 = vmatprep.subr.mxu0 0.0
  %67 = vmatpush1.msra.mxu0 %v48
  %68 = vmatprep.subr.mxu0 0.0
  %69 = vmatpush1.msra.mxu0 %v49
  %70 = vmatprep.subr.mxu0 0.0
  %71 = vmatpush1.msra.mxu0 %v50
  %72 = vmatprep.subr.mxu0 0.0
  %73 = vmatpush1.msra.mxu0 0.0
  %74 = vmatprep.subr.mxu0 0.0
  %75 = vmatpush1.msra.mxu0 0.0
  %76 = vmatprep.subr.mxu0 0.0
  %77 = vmatpush1.msra.mxu0 0.0
  %78 = vmatprep.subr.mxu0 0.0
  %79 = vmatpush1.msra.mxu0 0.0
  %80 = vmatprep.subr.mxu0 0.0
  %81 = vmatpush1.msra.mxu0 0.0
  %82 = vmatprep.subr.mxu0 0.0
  %83 = vmatpush1.msra.mxu0 0.0
  %84 = vmatprep.subr.mxu0 0.0
  %85 = vmatpush1.msra.mxu0 0.0
  %86 = vmatprep.subr.mxu0 0.0
  %87 = vmatpush1.msra.mxu0 0.0
  %88 = vmatprep.subr.mxu0 0.0
  %89 = vmatpush1.msra.mxu0 0.0
  %90 = vmatprep.subr.mxu0 0.0
  %91 = vmatpush1.msra.mxu0 0.0
  %92 = vmatprep.subr.mxu0 0.0
  %93 = vmatpush1.msra.mxu0 0.0
  %94 = vmatprep.subr.mxu0 0.0
  %95 = vmatpush1.msra.mxu0 0.0
  %96 = vmatprep.subr.mxu0 0.0
  %97 = vmatpush1.msra.mxu0 0.0
  %98 = vmatprep.subr.mxu0 0.0
  %99 = vmatpush1.msra.mxu0 0.0
  %100 = vmatprep.subr.mxu0 0.0
  %101 = vmatpush1.msra.mxu0 0.0
  %102 = vmatprep.subr.mxu0 0.0
  %103 = vmatpush1.msra.mxu0 0.0
  %104 = vmatprep.subr.mxu0 0.0
  %105 = vmatpush1.msra.mxu0 0.0
  %106 = vmatprep.subr.mxu0 0.0
  %107 = vmatpush1.msra.mxu0 0.0
  %108 = vmatprep.subr.mxu0 0.0
  %109 = vmatpush1.msra.mxu0 0.0
  %110 = vmatprep.subr.mxu0 0.0
  %111 = vmatpush1.msra.mxu0 0.0
  %112 = vmatprep.subr.mxu0 0.0
  %113 = vmatpush1.msra.mxu0 0.0
  %114 = vmatprep.subr.mxu0 0.0
  %115 = vmatpush1.msra.mxu0 0.0
  %116 = vmatprep.subr.mxu0 0.0
  %117 = vmatpush1.msra.mxu0 0.0
  %118 = vmatprep.subr.mxu0 0.0
  %119 = vmatpush1.msra.mxu0 0.0
  %120 = vmatprep.subr.mxu0 0.0
  %121 = vmatpush1.msra.mxu0 0.0
  %122 = vmatprep.subr.mxu0 0.0
  %123 = vmatpush1.msra.mxu0 0.0
  %124 = vmatprep.subr.mxu0 0.0
  %125 = vmatpush1.msra.mxu0 0.0
  %126 = vmatprep.subr.mxu0 0.0
  %127 = vmatpush1.msra.mxu0 0.0
  %128 = vmatprep.mubr.f32.mxu0 0.0
  %129 = vmatmul.mubr.f32.gmra.mrb[0].mxu0 %v62
  %v130 = vpop.f32.mrb[0].mxu0
  %v131 = vadd.f32 0.0, %v130
  %v132 = vpop.f32.mrb[0].mxu0
  %133 = vdwg.mxu0
  %v134 = vld [vmem:[%s5] sm:$0xff]
  %v135 = vld [vmem:[%s5 + $0x8] sm:$0xff]
  %v136 = vld [vmem:[%s5 + $0x10] sm:$0xff]
  %v137 = vld [vmem:[%s5 + $0x18] sm:$0xff]
  %v138 = vld [vmem:[%s6] sm:$0x1]
  %v140 = vlaneseq
  %v141 = vshrl.u32 %v140, 7
  %v142 = vsub.s32 0, %v141
  %v143 = vrot.slane %v138, %v142
  %v146 = vsel %vm60, %v46, 0
  %148 = vmatprep.subr.mxu0 0.0
  %149 = vmatpush1.msra.mxu0 %v134
  %150 = vmatprep.subr.mxu0 0.0
  %151 = vmatpush1.msra.mxu0 %v135
  %152 = vmatprep.subr.mxu0 0.0
  %153 = vmatpush1.msra.mxu0 %v136
  %154 = vmatprep.subr.mxu0 0.0
  %155 = vmatpush1.msra.mxu0 %v137
  %156 = vmatprep.subr.mxu0 0.0
  %157 = vmatpush1.msra.mxu0 0.0
  %158 = vmatprep.subr.mxu0 0.0
  %159 = vmatpush1.msra.mxu0 0.0
  %160 = vmatprep.subr.mxu0 0.0
  %161 = vmatpush1.msra.mxu0 0.0
  %162 = vmatprep.subr.mxu0 0.0
  %163 = vmatpush1.msra.mxu0 0.0
  %164 = vmatprep.subr.mxu0 0.0
  %165 = vmatpush1.msra.mxu0 0.0
  %166 = vmatprep.subr.mxu0 0.0
  %167 = vmatpush1.msra.mxu0 0.0
  %168 = vmatprep.subr.mxu0 0.0
  %169 = vmatpush1.msra.mxu0 0.0
  %170 = vmatprep.subr.mxu0 0.0
  %171 = vmatpush1.msra.mxu0 0.0
  %172 = vmatprep.subr.mxu0 0.0
  %173 = vmatpush1.msra.mxu0 0.0
  %174 = vmatprep.subr.mxu0 0.0
  %175 = vmatpush1.msra.mxu0 0.0
  %176 = vmatprep.subr.mxu0 0.0
  %177 = vmatpush1.msra.mxu0 0.0
  %178 = vmatprep.subr.mxu0 0.0
  %179 = vmatpush1.msra.mxu0 0.0
  %180 = vmatprep.subr.mxu0 0.0
  %181 = vmatpush1.msra.mxu0 0.0
  %182 = vmatprep.subr.mxu0 0.0
  %183 = vmatpush1.msra.mxu0 0.0
  %184 = vmatprep.subr.mxu0 0.0
  %185 = vmatpush1.msra.mxu0 0.0
  %186 = vmatprep.subr.mxu0 0.0
  %187 = vmatpush1.msra.mxu0 0.0
  %188 = vmatprep.subr.mxu0 0.0
  %189 = vmatpush1.msra.mxu0 0.0
  %190 = vmatprep.subr.mxu0 0.0
  %191 = vmatpush1.msra.mxu0 0.0
  %192 = vmatprep.subr.mxu0 0.0
  %193 = vmatpush1.msra.mxu0 0.0
  %194 = vmatprep.subr.mxu0 0.0
  %195 = vmatpush1.msra.mxu0 0.0
  %196 = vmatprep.subr.mxu0 0.0
  %197 = vmatpush1.msra.mxu0 0.0
  %198 = vmatprep.subr.mxu0 0.0
  %199 = vmatpush1.msra.mxu0 0.0
  %200 = vmatprep.subr.mxu0 0.0
  %201 = vmatpush1.msra.mxu0 0.0
  %202 = vmatprep.subr.mxu0 0.0
  %203 = vmatpush1.msra.mxu0 0.0
  %204 = vmatprep.subr.mxu0 0.0
  %205 = vmatpush1.msra.mxu0 0.0
  %206 = vmatprep.subr.mxu0 0.0
  %207 = vmatpush1.msra.mxu0 0.0
  %208 = vmatprep.subr.mxu0 0.0
  %209 = vmatpush1.msra.mxu0 0.0
  %210 = vmatprep.subr.mxu0 0.0
  %211 = vmatpush1.msra.mxu0 0.0
  %212 = vmatprep.mubr.f32.mxu0 0.0
  %213 = vmatmul.mubr.f32.gmra.mrb[0].mxu0 %v146
  %v214 = vpop.f32.mrb[0].mxu0
  %v215 = vadd.f32 %v143, %v214
  %v216 = vpop.f32.mrb[0].mxu0
  %217 = vdwg.mxu0
  %v218 = vld [vmem:[%s7] sm:$0xff]
  %v219 = vld [vmem:[%s7 + $0x8] sm:$0xff]
  %v220 = vld [vmem:[%s7 + $0x10] sm:$0xff]
  %v221 = vld [vmem:[%s7 + $0x18] sm:$0xff]
  %v223 = vsel %vm60, %v131, 0
  %225 = vmatprep.subr.mxu0 0.0
  %226 = vmatpush1.msra.mxu0 %v218
  %227 = vmatprep.subr.mxu0 0.0
  %228 = vmatpush1.msra.mxu0 %v219
  %229 = vmatprep.subr.mxu0 0.0
  %230 = vmatpush1.msra.mxu0 %v220
  %231 = vmatprep.subr.mxu0 0.0
  %232 = vmatpush1.msra.mxu0 %v221
  %233 = vmatprep.subr.mxu0 0.0
  %234 = vmatpush1.msra.mxu0 0.0
  %235 = vmatprep.subr.mxu0 0.0
  %236 = vmatpush1.msra.mxu0 0.0
  %237 = vmatprep.subr.mxu0 0.0
  %238 = vmatpush1.msra.mxu0 0.0
  %239 = vmatprep.subr.mxu0 0.0
  %240 = vmatpush1.msra.mxu0 0.0
  %241 = vmatprep.subr.mxu0 0.0
  %242 = vmatpush1.msra.mxu0 0.0
  %243 = vmatprep.subr.mxu0 0.0
  %244 = vmatpush1.msra.mxu0 0.0
  %245 = vmatprep.subr.mxu0 0.0
  %246 = vmatpush1.msra.mxu0 0.0
  %247 = vmatprep.subr.mxu0 0.0
  %248 = vmatpush1.msra.mxu0 0.0
  %249 = vmatprep.subr.mxu0 0.0
  %250 = vmatpush1.msra.mxu0 0.0
  %251 = vmatprep.subr.mxu0 0.0
  %252 = vmatpush1.msra.mxu0 0.0
  %253 = vmatprep.subr.mxu0 0.0
  %254 = vmatpush1.msra.mxu0 0.0
  %255 = vmatprep.subr.mxu0 0.0
  %256 = vmatpush1.msra.mxu0 0.0
  %257 = vmatprep.subr.mxu0 0.0
  %258 = vmatpush1.msra.mxu0 0.0
  %259 = vmatprep.subr.mxu0 0.0
  %260 = vmatpush1.msra.mxu0 0.0
  %261 = vmatprep.subr.mxu0 0.0
  %262 = vmatpush1.msra.mxu0 0.0
  %263 = vmatprep.subr.mxu0 0.0
  %264 = vmatpush1.msra.mxu0 0.0
  %265 = vmatprep.subr.mxu0 0.0
  %266 = vmatpush1.msra.mxu0 0.0
  %267 = vmatprep.subr.mxu0 0.0
  %268 = vmatpush1.msra.mxu0 0.0
  %269 = vmatprep.subr.mxu0 0.0
  %270 = vmatpush1.msra.mxu0 0.0
  %271 = vmatprep.subr.mxu0 0.0
  %272 = vmatpush1.msra.mxu0 0.0
  %273 = vmatprep.subr.mxu0 0.0
  %274 = vmatpush1.msra.mxu0 0.0
  %275 = vmatprep.subr.mxu0 0.0
  %276 = vmatpush1.msra.mxu0 0.0
  %277 = vmatprep.subr.mxu0 0.0
  %278 = vmatpush1.msra.mxu0 0.0
  %279 = vmatprep.subr.mxu0 0.0
  %280 = vmatpush1.msra.mxu0 0.0
  %281 = vmatprep.subr.mxu0 0.0
  %282 = vmatpush1.msra.mxu0 0.0
  %283 = vmatprep.subr.mxu0 0.0
  %284 = vmatpush1.msra.mxu0 0.0
  %285 = vmatprep.subr.mxu0 0.0
  %286 = vmatpush1.msra.mxu0 0.0
  %287 = vmatprep.subr.mxu0 0.0
  %288 = vmatpush1.msra.mxu0 0.0
  %289 = vmatprep.mubr.f32.mxu0 0.0
  %290 = vmatmul.mubr.f32.gmra.mrb[0].mxu0 %v223
  %v291 = vpop.f32.mrb[0].mxu0
  %v292 = vadd.f32 0.0, %v291
  %v293 = vpop.f32.mrb[0].mxu0
  %294 = vdwg.mxu0
  %v295 = vadd.f32 %v215, %v292
  %v296 = vld [vmem:[%s8] sm:$0x1]
  %v298 = vlaneseq
  %v299 = vshrl.u32 %v298, 7
  %v300 = vsub.s32 0, %v299
  %v301 = vrot.slane %v296, %v300
  %v303 = vadd.f32 %v295, %v301
  %v304 = vsub.f32 0.0, %v303
  %v305 = vmul.f32 %v304, 1.442695
  %v306 = vpow.pop %v305
  %v307 = vadd.f32 %v306, 1.0
  %v308 = vrcp.pop %v307
  %v309 = vmul.f32 1.0, %v308
  %v310 = vtanh.pop %v303
  %v311 = vld [vmem:[%s9] sm:$0xff]
  %v312 = vld [vmem:[%s9 + $0x8] sm:$0xff]
  %v313 = vld [vmem:[%s9 + $0x10] sm:$0xff]
  %v314 = vld [vmem:[%s9 + $0x18] sm:$0xff]
  %v315 = vld [vmem:[%s10] sm:$0x1]
  %v317 = vlaneseq
  %v318 = vshrl.u32 %v317, 7
  %v319 = vsub.s32 0, %v318
  %v320 = vrot.slane %v315, %v319
  %322 = vmatprep.subr.mxu0 0.0
  %323 = vmatpush1.msra.mxu0 %v311
  %324 = vmatprep.subr.mxu0 0.0
  %325 = vmatpush1.msra.mxu0 %v312
  %326 = vmatprep.subr.mxu0 0.0
  %327 = vmatpush1.msra.mxu0 %v313
  %328 = vmatprep.subr.mxu0 0.0
  %329 = vmatpush1.msra.mxu0 %v314
  %330 = vmatprep.subr.mxu0 0.0
  %331 = vmatpush1.msra.mxu0 0.0
  %332 = vmatprep.subr.mxu0 0.0
  %333 = vmatpush1.msra.mxu0 0.0
  %334 = vmatprep.subr.mxu0 0.0
  %335 = vmatpush1.msra.mxu0 0.0
  %336 = vmatprep.subr.mxu0 0.0
  %337 = vmatpush1.msra.mxu0 0.0
  %338 = vmatprep.subr.mxu0 0.0
  %339 = vmatpush1.msra.mxu0 0.0
  %340 = vmatprep.subr.mxu0 0.0
  %341 = vmatpush1.msra.mxu0 0.0
  %342 = vmatprep.subr.mxu0 0.0
  %343 = vmatpush1.msra.mxu0 0.0
  %344 = vmatprep.subr.mxu0 0.0
  %345 = vmatpush1.msra.mxu0 0.0
  %346 = vmatprep.subr.mxu0 0.0
  %347 = vmatpush1.msra.mxu0 0.0
  %348 = vmatprep.subr.mxu0 0.0
  %349 = vmatpush1.msra.mxu0 0.0
  %350 = vmatprep.subr.mxu0 0.0
  %351 = vmatpush1.msra.mxu0 0.0
  %352 = vmatprep.subr.mxu0 0.0
  %353 = vmatpush1.msra.mxu0 0.0
  %354 = vmatprep.subr.mxu0 0.0
  %355 = vmatpush1.msra.mxu0 0.0
  %356 = vmatprep.subr.mxu0 0.0
  %357 = vmatpush1.msra.mxu0 0.0
  %358 = vmatprep.subr.mxu0 0.0
  %359 = vmatpush1.msra.mxu0 0.0
  %360 = vmatprep.subr.mxu0 0.0
  %361 = vmatpush1.msra.mxu0 0.0
  %362 = vmatprep.subr.mxu0 0.0
  %363 = vmatpush1.msra.mxu0 0.0
  %364 = vmatprep.subr.mxu0 0.0
  %365 = vmatpush1.msra.mxu0 0.0
  %366 = vmatprep.subr.mxu0 0.0
  %367 = vmatpush1.msra.mxu0 0.0
  %368 = vmatprep.subr.mxu0 0.0
  %369 = vmatpush1.msra.mxu0 0.0
  %370 = vmatprep.subr.mxu0 0.0
  %371 = vmatpush1.msra.mxu0 0.0
  %372 = vmatprep.subr.mxu0 0.0
  %373 = vmatpush1.msra.mxu0 0.0
  %374 = vmatprep.subr.mxu0 0.0
  %375 = vmatpush1.msra.mxu0 0.0
  %376 = vmatprep.subr.mxu0 0.0
  %377 = vmatpush1.msra.mxu0 0.0
  %378 = vmatprep.subr.mxu0 0.0
  %379 = vmatpush1.msra.mxu0 0.0
  %380 = vmatprep.subr.mxu0 0.0
  %381 = vmatpush1.msra.mxu0 0.0
  %382 = vmatprep.subr.mxu0 0.0
  %383 = vmatpush1.msra.mxu0 0.0
  %384 = vmatprep.subr.mxu0 0.0
  %385 = vmatpush1.msra.mxu0 0.0
  %386 = vmatprep.mubr.f32.mxu0 0.0
  %387 = vmatmul.mubr.f32.gmra.mrb[0].mxu0 %v146
  %v388 = vpop.f32.mrb[0].mxu0
  %v389 = vadd.f32 %v320, %v388
  %v390 = vpop.f32.mrb[0].mxu0
  %391 = vdwg.mxu0
  %vm392 = vcmask 64512
  %v394 = vsel %vm392, %v56, 0
  %v397 = vsel %vm392, %v57, 0
  %v400 = vsel %vm392, %v58, 0
  %v403 = vsel %vm392, %v59, 0
  %405 = vmatprep.subr.mxu0 0.0
  %406 = vmatpush1.msra.mxu0 %v389
  %407 = vmatprep.subr.mxu0 0.0
  %408 = vmatpush1.msra.mxu0 0.0
  %409 = vmatprep.subr.mxu0 0.0
  %410 = vmatpush1.msra.mxu0 0.0
  %411 = vmatprep.subr.mxu0 0.0
  %412 = vmatpush1.msra.mxu0 0.0
  %413 = vmatprep.subr.mxu0 0.0
  %414 = vmatpush1.msra.mxu0 0.0
  %415 = vmatprep.subr.mxu0 0.0
  %416 = vmatpush1.msra.mxu0 0.0
  %417 = vmatprep.subr.mxu0 0.0
  %418 = vmatpush1.msra.mxu0 0.0
  %419 = vmatprep.subr.mxu0 0.0
  %420 = vmatpush1.msra.mxu0 0.0
  %421 = vmatprep.subr.mxu0 0.0
  %422 = vmatpush1.msra.mxu0 0.0
  %423 = vmatprep.subr.mxu0 0.0
  %424 = vmatpush1.msra.mxu0 0.0
  %425 = vmatprep.subr.mxu0 0.0
  %426 = vmatpush1.msra.mxu0 0.0
  %427 = vmatprep.subr.mxu0 0.0
  %428 = vmatpush1.msra.mxu0 0.0
  %429 = vmatprep.subr.mxu0 0.0
  %430 = vmatpush1.msra.mxu0 0.0
  %431 = vmatprep.subr.mxu0 0.0
  %432 = vmatpush1.msra.mxu0 0.0
  %433 = vmatprep.subr.mxu0 0.0
  %434 = vmatpush1.msra.mxu0 0.0
  %435 = vmatprep.subr.mxu0 0.0
  %436 = vmatpush1.msra.mxu0 0.0
  %437 = vmatprep.subr.mxu0 0.0
  %438 = vmatpush1.msra.mxu0 0.0
  %439 = vmatprep.subr.mxu0 0.0
  %440 = vmatpush1.msra.mxu0 0.0
  %441 = vmatprep.subr.mxu0 0.0
  %442 = vmatpush1.msra.mxu0 0.0
  %443 = vmatprep.subr.mxu0 0.0
  %444 = vmatpush1.msra.mxu0 0.0
  %445 = vmatprep.subr.mxu0 0.0
  %446 = vmatpush1.msra.mxu0 0.0
  %447 = vmatprep.subr.mxu0 0.0
  %448 = vmatpush1.msra.mxu0 0.0
  %449 = vmatprep.subr.mxu0 0.0
  %450 = vmatpush1.msra.mxu0 0.0
  %451 = vmatprep.subr.mxu0 0.0
  %452 = vmatpush1.msra.mxu0 0.0
  %453 = vmatprep.subr.mxu0 0.0
  %454 = vmatpush1.msra.mxu0 0.0
  %455 = vmatprep.subr.mxu0 0.0
  %456 = vmatpush1.msra.mxu0 0.0
  %457 = vmatprep.subr.mxu0 0.0
  %458 = vmatpush1.msra.mxu0 0.0
  %459 = vmatprep.subr.mxu0 0.0
  %460 = vmatpush1.msra.mxu0 0.0
  %461 = vmatprep.subr.mxu0 0.0
  %462 = vmatpush1.msra.mxu0 0.0
  %463 = vmatprep.subr.mxu0 0.0
  %464 = vmatpush1.msra.mxu0 0.0
  %465 = vmatprep.subr.mxu0 0.0
  %466 = vmatpush1.msra.mxu0 0.0
  %467 = vmatprep.subr.mxu0 0.0
  %468 = vmatpush1.msra.mxu0 0.0
  %469 = vmatprep.mubr.f32.mxu0 0.0
  %470 = vmatmul.mubr.f32.gmra.mrb[0].mxu0 %v394
  %v471 = vpop.f32.mrb[0].mxu0
  %v472 = vadd.f32 0.0, %v471
  %v473 = vpop.f32.mrb[0].mxu0
  %474 = vmatprep.mubr.f32.mxu0 0.0
  %475 = vmatmul.mubr.f32.gmra.mrb[0].mxu0 %v397
  %v476 = vpop.f32.mrb[0].mxu0
  %v477 = vadd.f32 0.0, %v476
  %v478 = vpop.f32.mrb[0].mxu0
  %479 = vmatprep.mubr.f32.mxu0 0.0
  %480 = vmatmul.mubr.f32.gmra.mrb[0].mxu0 %v400
  %v481 = vpop.f32.mrb[0].mxu0
  %v482 = vadd.f32 0.0, %v481
  %v483 = vpop.f32.mrb[0].mxu0
  %484 = vmatprep.mubr.f32.mxu0 0.0
  %485 = vmatmul.mubr.f32.gmra.mrb[0].mxu0 %v403
  %v486 = vpop.f32.mrb[0].mxu0
  %v487 = vadd.f32 0.0, %v486
  %v488 = vpop.f32.mrb[0].mxu0
  %489 = vdwg.mxu0
  %v490 = vld [vmem:[%s11] sm:$0xff]
  %v491 = vld [vmem:[%s11 + $0x8] sm:$0xff]
  %v492 = vld [vmem:[%s11 + $0x10] sm:$0xff]
  %v493 = vld [vmem:[%s11 + $0x18] sm:$0xff]
  %v494 = vld [vmem:[%s12] sm:$0x1]
  %v496 = vlaneseq
  %v497 = vshrl.u32 %v496, 7
  %v498 = vsub.s32 0, %v497
  %v499 = vrot.slane %v494, %v498
  %v502 = vsel %vm60, %v47, 0
  %v505 = vsel %vm60, %v48, 0
  %v508 = vsel %vm60, %v49, 0
  %v511 = vsel %vm60, %v50, 0
  %513 = vmatprep.subr.mxu0 0.0
  %514 = vmatpush1.msra.mxu0 %v490
  %515 = vmatprep.subr.mxu0 0.0
  %516 = vmatpush1.msra.mxu0 %v491
  %517 = vmatprep.subr.mxu0 0.0
  %518 = vmatpush1.msra.mxu0 %v492
  %519 = vmatprep.subr.mxu0 0.0
  %520 = vmatpush1.msra.mxu0 %v493
  %521 = vmatprep.subr.mxu0 0.0
  %522 = vmatpush1.msra.mxu0 0.0
  %523 = vmatprep.subr.mxu0 0.0
  %524 = vmatpush1.msra.mxu0 0.0
  %525 = vmatprep.subr.mxu0 0.0
  %526 = vmatpush1.msra.mxu0 0.0
  %527 = vmatprep.subr.mxu0 0.0
  %528 = vmatpush1.msra.mxu0 0.0
  %529 = vmatprep.subr.mxu0 0.0
  %530 = vmatpush1.msra.mxu0 0.0
  %531 = vmatprep.subr.mxu0 0.0
  %532 = vmatpush1.msra.mxu0 0.0
  %533 = vmatprep.subr.mxu0 0.0
  %534 = vmatpush1.msra.mxu0 0.0
  %535 = vmatprep.subr.mxu0 0.0
  %536 = vmatpush1.msra.mxu0 0.0
  %537 = vmatprep.subr.mxu0 0.0
  %538 = vmatpush1.msra.mxu0 0.0
  %539 = vmatprep.subr.mxu0 0.0
  %540 = vmatpush1.msra.mxu0 0.0
  %541 = vmatprep.subr.mxu0 0.0
  %542 = vmatpush1.msra.mxu0 0.0
  %543 = vmatprep.subr.mxu0 0.0
  %544 = vmatpush1.msra.mxu0 0.0
  %545 = vmatprep.subr.mxu0 0.0
  %546 = vmatpush1.msra.mxu0 0.0
  %547 = vmatprep.subr.mxu0 0.0
  %548 = vmatpush1.msra.mxu0 0.0
  %549 = vmatprep.subr.mxu0 0.0
  %550 = vmatpush1.msra.mxu0 0.0
  %551 = vmatprep.subr.mxu0 0.0
  %552 = vmatpush1.msra.mxu0 0.0
  %553 = vmatprep.subr.mxu0 0.0
  %554 = vmatpush1.msra.mxu0 0.0
  %555 = vmatprep.subr.mxu0 0.0
  %556 = vmatpush1.msra.mxu0 0.0
  %557 = vmatprep.subr.mxu0 0.0
  %558 = vmatpush1.msra.mxu0 0.0
  %559 = vmatprep.subr.mxu0 0.0
  %560 = vmatpush1.msra.mxu0 0.0
  %561 = vmatprep.subr.mxu0 0.0
  %562 = vmatpush1.msra.mxu0 0.0
  %563 = vmatprep.subr.mxu0 0.0
  %564 = vmatpush1.msra.mxu0 0.0
  %565 = vmatprep.subr.mxu0 0.0
  %566 = vmatpush1.msra.mxu0 0.0
  %567 = vmatprep.subr.mxu0 0.0
  %568 = vmatpush1.msra.mxu0 0.0
  %569 = vmatprep.subr.mxu0 0.0
  %570 = vmatpush1.msra.mxu0 0.0
  %571 = vmatprep.subr.mxu0 0.0
  %572 = vmatpush1.msra.mxu0 0.0
  %573 = vmatprep.subr.mxu0 0.0
  %574 = vmatpush1.msra.mxu0 0.0
  %575 = vmatprep.subr.mxu0 0.0
  %576 = vmatpush1.msra.mxu0 0.0
  %577 = vmatprep.mubr.f32.mxu0 0.0
  %578 = vmatmul.mubr.f32.gmra.mrb[0].mxu0 %v502
  %v579 = vpop.f32.mrb[0].mxu0
  %v580 = vadd.f32 %v499, %v579
  %v581 = vpop.f32.mrb[0].mxu0
  %582 = vmatprep.mubr.f32.mxu0 0.0
  %583 = vmatmul.mubr.f32.gmra.mrb[0].mxu0 %v505
  %v584 = vpop.f32.mrb[0].mxu0
  %v585 = vadd.f32 %v499, %v584
  %v586 = vpop.f32.mrb[0].mxu0
  %587 = vmatprep.mubr.f32.mxu0 0.0
  %588 = vmatmul.mubr.f32.gmra.mrb[0].mxu0 %v508
  %v589 = vpop.f32.mrb[0].mxu0
  %v590 = vadd.f32 %v499, %v589
  %v591 = vpop.f32.mrb[0].mxu0
  %592 = vmatprep.mubr.f32.mxu0 0.0
  %593 = vmatmul.mubr.f32.gmra.mrb[0].mxu0 %v511
  %v594 = vpop.f32.mrb[0].mxu0
  %v595 = vadd.f32 %v499, %v594
  %v596 = vpop.f32.mrb[0].mxu0
  %597 = vdwg.mxu0
  %v598 = vadd.f32 %v580, %v472
  %v599 = vadd.f32 %v585, %v477
  %v600 = vadd.f32 %v590, %v482
  %v601 = vadd.f32 %v595, %v487
  %v602 = vsub.f32 0.0, %v598
  %v603 = vsub.f32 0.0, %v599
  %v604 = vsub.f32 0.0, %v600
  %v605 = vsub.f32 0.0, %v601
  %v606 = vmul.f32 %v602, 1.442695
  %v607 = vpow.pop %v606
  %v608 = vmul.f32 %v603, 1.442695
  %v609 = vpow.pop %v608
  %v610 = vmul.f32 %v604, 1.442695
  %v611 = vpow.pop %v610
  %v612 = vmul.f32 %v605, 1.442695
  %v613 = vpow.pop %v612
  %v614 = vadd.f32 %v607, 1.0
  %v615 = vadd.f32 %v609, 1.0
  %v616 = vadd.f32 %v611, 1.0
  %v617 = vadd.f32 %v613, 1.0
  %v618 = vrcp.pop %v614
  %v619 = vmul.f32 1.0, %v618
  %v620 = vrcp.pop %v615
  %v621 = vmul.f32 1.0, %v620
  %v622 = vrcp.pop %v616
  %v623 = vmul.f32 1.0, %v622
  %v624 = vrcp.pop %v617
  %v625 = vmul.f32 1.0, %v624
  %v626 = vmul.f32 %v619, %v51
  %v627 = vmul.f32 %v621, %v52
  %v628 = vmul.f32 %v623, %v53
  %v629 = vmul.f32 %v625, %v54
  %630 = vmatprep.subr.mxu0 0.0
  %631 = vmatpush1.msra.mxu0 %v626
  %632 = vmatprep.subr.mxu0 0.0
  %633 = vmatpush1.msra.mxu0 %v627
  %634 = vmatprep.subr.mxu0 0.0
  %635 = vmatpush1.msra.mxu0 %v628
  %636 = vmatprep.subr.mxu0 0.0
  %637 = vmatpush1.msra.mxu0 %v629
  %638 = vmatprep.subr.mxu0 0.0
  %639 = vmatpush1.msra.mxu0 0.0
  %640 = vmatprep.subr.mxu0 0.0
  %641 = vmatpush1.msra.mxu0 0.0
  %642 = vmatprep.subr.mxu0 0.0
  %643 = vmatpush1.msra.mxu0 0.0
  %644 = vmatprep.subr.mxu0 0.0
  %645 = vmatpush1.msra.mxu0 0.0
  %646 = vmatprep.subr.mxu0 0.0
  %647 = vmatpush1.msra.mxu0 0.0
  %648 = vmatprep.subr.mxu0 0.0
  %649 = vmatpush1.msra.mxu0 0.0
  %650 = vmatprep.subr.mxu0 0.0
  %651 = vmatpush1.msra.mxu0 0.0
  %652 = vmatprep.subr.mxu0 0.0
  %653 = vmatpush1.msra.mxu0 0.0
  %654 = vmatprep.subr.mxu0 0.0
  %655 = vmatpush1.msra.mxu0 0.0
  %656 = vmatprep.subr.mxu0 0.0
  %657 = vmatpush1.msra.mxu0 0.0
  %658 = vmatprep.subr.mxu0 0.0
  %659 = vmatpush1.msra.mxu0 0.0
  %660 = vmatprep.subr.mxu0 0.0
  %661 = vmatpush1.msra.mxu0 0.0
  %662 = vmatprep.subr.mxu0 0.0
  %663 = vmatpush1.msra.mxu0 0.0
  %664 = vmatprep.subr.mxu0 0.0
  %665 = vmatpush1.msra.mxu0 0.0
  %666 = vmatprep.subr.mxu0 0.0
  %667 = vmatpush1.msra.mxu0 0.0
  %668 = vmatprep.subr.mxu0 0.0
  %669 = vmatpush1.msra.mxu0 0.0
  %670 = vmatprep.subr.mxu0 0.0
  %671 = vmatpush1.msra.mxu0 0.0
  %672 = vmatprep.subr.mxu0 0.0
  %673 = vmatpush1.msra.mxu0 0.0
  %674 = vmatprep.subr.mxu0 0.0
  %675 = vmatpush1.msra.mxu0 0.0
  %676 = vmatprep.subr.mxu0 0.0
  %677 = vmatpush1.msra.mxu0 0.0
  %678 = vmatprep.subr.mxu0 0.0
  %679 = vmatpush1.msra.mxu0 0.0
  %680 = vmatprep.subr.mxu0 0.0
  %681 = vmatpush1.msra.mxu0 0.0
  %682 = vmatprep.subr.mxu0 0.0
  %683 = vmatpush1.msra.mxu0 0.0
  %684 = vmatprep.subr.mxu0 0.0
  %685 = vmatpush1.msra.mxu0 0.0
  %686 = vmatprep.subr.mxu0 0.0
  %687 = vmatpush1.msra.mxu0 0.0
  %688 = vmatprep.subr.mxu0 0.0
  %689 = vmatpush1.msra.mxu0 0.0
  %690 = vmatprep.subr.mxu0 0.0
  %691 = vmatpush1.msra.mxu0 0.0
  %692 = vmatprep.subr.mxu0 0.0
  %693 = vmatpush1.msra.mxu0 0.0
  %694 = vmatprep.mubr.f32.mxu0 0.0
  %695 = vmatmul.mubr.f32.gmra.mrb[0].mxu0 %v62
  %v696 = vpop.f32.mrb[0].mxu0
  %v697 = vadd.f32 0.0, %v696
  %v698 = vpop.f32.mrb[0].mxu0
  %699 = vdwg.mxu0
  %701 = vrot.lane.b32.xlu0 %v310, 64
  %v702 = vpop.permute.xlu0 %701
  %v704 = vmul.f32 %v309, %v702
  %v705 = vadd.f32 %v704, %v697
  %v706 = vtanh.pop %v705
  %708 = vrot.lane.b32.xlu0 %v706, 32
  %v709 = vpop.permute.xlu0 %708
  %v711 = vmul.f32 %v309, %v709
  %712 = vst.msk [vmem:[%s13] sm:$0xff] %vm60, %v705
  %714 = vrot.lane.b32.xlu0 %v711, 96
  %v715 = vpop.permute.xlu0 %714
  %717 = vst.msk [vmem:[%s14] sm:$0xff] %vm60, %v715
  // Predicated region
  $region54: #{_level_step.1} parent=0 // pred_check
    _
  $region55: #{_level_step.1} parent=0 // pred_check_branch
    %719 = sbr.rel (0) target = $region57
  $region56: #{_level_step.1} parent=0 // pred_region
    _
  $region57: #{_level_step.1} parent=0 // pred_fallthru
    _
  // Predicated region
  $region58: #{_level_step.1} parent=0 // pred_check
    _
  $region59: #{_level_step.1} parent=0 // pred_check_branch
    %721 = sbr.rel (0) target = $region61
  $region60: #{_level_step.1} parent=0 // pred_region
    _
  $region61: #{_level_step.1} parent=0 // pred_fallthru
    _
  // Predicated region
  $region62: #{_level_step.1} parent=0 // pred_check
    _
  $region63: #{_level_step.1} parent=0 // pred_check_branch
    %723 = sbr.rel (0) target = $region65
  $region64: #{_level_step.1} parent=0 // pred_region
    _
  $region65: #{_level_step.1} parent=0 // pred_fallthru
    _
  // Predicated region
  $region66: #{_level_step.1} parent=0 // pred_check
    _
  $region67: #{_level_step.1} parent=0 // pred_check_branch
    %725 = sbr.rel (0) target = $region69
  $region68: #{_level_step.1} parent=0 // pred_region
    _
  $region69: #{_level_step.1} parent=0 // pred_fallthru
    _

</llo_original>
